<compile_context>
chip_gen: v5e
topology: v5e:2x2
jax: 0.10.0
libtpu: 0.0.40
codegen_flags: <defaults>
</compile_context>

<pallas_src>
import numpy as np
import jax
import jax.numpy as jnp
from jax import lax
from jax.experimental import pallas as pl
from jax.experimental.pallas import tpu as pltpu

# ---- small config consistent with the module semantics ----
STEP_SIZE = 16
NUM_VAR = 2
KERNEL_SIZE = 3
D_MODEL = 128
LENGTH_POINT = 64
TIME_STEP = LENGTH_POINT // STEP_SIZE   # 4
BATCH = 2


# ------------- host-side NumPy reference of the (affine) module -------------
# torch.nn.Conv1d semantics: cross-correlation with explicit zero padding.

def _np_conv1d(x, w, b, padding, groups=1):
    x = np.asarray(x)
    w = np.asarray(w)
    b = np.asarray(b)
    N, Cin, T = x.shape
    Cout, cinpg, K = w.shape
    coutpg = Cout // groups
    xp = np.pad(x, ((0, 0), (0, 0), (padding, padding)))
    y = np.zeros((N, Cout, T), dtype=x.dtype)
    for g in range(groups):
        xg = xp[:, g * cinpg:(g + 1) * cinpg, :]
        wg = w[g * coutpg:(g + 1) * coutpg]
        acc = np.zeros((N, coutpg, T), dtype=x.dtype)
        for j in range(K):
            acc += np.einsum('oi,nit->not', wg[:, :, j], xg[:, :, j:j + T])
        y[:, g * coutpg:(g + 1) * coutpg, :] = acc
    return y + b.reshape(1, -1, 1)


def embedding_forward_np(x, raw):
    """Pure NumPy forward of the PyTorch module (used only for host folding)."""
    n, S, L, D = NUM_VAR, STEP_SIZE, TIME_STEP, D_MODEL
    N = x.shape[0]
    xr = x.reshape(N, n, S, L).transpose(0, 1, 3, 2)                      # (N,n,L,S)
    y = np.einsum('bnls,ds->bnld', xr, raw['w_emb']) + raw['b_emb']       # Linear S->D
    y = y.reshape(N * n * L, 1, D)
    y = _np_conv1d(y, raw['w_conv0_3d'], raw['b_conv0'], padding=1)       # conv0
    y = y.reshape(N, n * L, D)
    y = _np_conv1d(y, raw['W1'], raw['b1'], padding=1, groups=n)          # conv1, groups=num_var
    y = y.reshape(N, n, L, D).transpose(0, 2, 1, 3).reshape(N, L * n, D)  # (n l) -> (l n)
    y = _np_conv1d(y, raw['W2'], raw['b2'], padding=1, groups=L)          # conv2, groups=time_step
    y = y.reshape(N * L, n, D)
    y = _np_conv1d(y, raw['W3'], raw['b3'], padding=0)                    # conv3, 1x1
    return y.reshape(N, L, D)


def fold_params(raw):
    """Fold the whole affine module into one matmul weight + bias (host side).

    The module has no nonlinearity, so per batch row the forward is an exact
    affine map  out = x_flat @ W_total + bias.  W_total/bias are extracted by
    probing the float64 NumPy reference with the zero vector and the identity
    basis.  Batch-independent: no kron(I_B, .) anywhere."""
    n, S, L, D = NUM_VAR, STEP_SIZE, TIME_STEP, D_MODEL
    in_dim = n * S * L                      # flattened (num_var, length_point) = 128
    out_dim = L * D                         # 512
    raw64 = {k: np.asarray(v, np.float64) for k, v in raw.items()}
    probe = np.concatenate([np.zeros((1, in_dim)), np.eye(in_dim)], axis=0)
    out = embedding_forward_np(probe.reshape(1 + in_dim, n, S * L), raw64)
    out = out.reshape(1 + in_dim, out_dim)
    bias = out[0]                           # F(0)  -> all propagated biases
    W = out[1:] - bias[None, :]             # F(e_i) - F(0) -> exact linear part
    return {
        'W': jnp.asarray(W, jnp.bfloat16),               # (128, 512) bf16: halves weight DMA
        'bias': jnp.asarray(bias[None, :], jnp.float32),  # (1, 512) f32
    }


# ---------------- the single fused Pallas kernel ----------------

def fused_embedding_kernel(x_ref, w_ref, b_ref, o_ref):
    # One MXU matmul (bf16 x bf16, f32 accumulate) + broadcast bias add.
    x16 = x_ref[...].astype(jnp.bfloat16)
    o_ref[...] = (jnp.dot(x16, w_ref[...], preferred_element_type=jnp.float32)
                  + b_ref[...])


@jax.jit
def embedding_forward_pallas(x, p):
    B = x.shape[0]
    L, D = TIME_STEP, D_MODEL
    x_flat = x.reshape(B, -1)                            # (B, n*S*L), matches W row layout
    in_dim, out_dim = p['W'].shape
    assert x_flat.shape[1] == in_dim, (x_flat.shape, p['W'].shape)

    vmem = pl.BlockSpec(memory_space=pltpu.MemorySpace.VMEM)
    flops = 2 * B * in_dim * out_dim
    bytes_accessed = (x_flat.size * 4          # x, f32
                      + p['W'].size * 2        # weight, bf16
                      + p['bias'].size * 4     # bias, f32
                      + B * out_dim * 4)       # output, f32
    out = pl.pallas_call(
        fused_embedding_kernel,
        out_shape=jax.ShapeDtypeStruct((B, out_dim), jnp.float32),
        in_specs=[vmem, vmem, vmem],
        out_specs=vmem,
        cost_estimate=pl.CostEstimate(flops=flops, transcendentals=0,
                                      bytes_accessed=bytes_accessed),
    )(x_flat, p['W'], p['bias'])
    return out.reshape(B, L, D)


# --------- independent pure-JAX reference (raw weights, lax convs) ----------

def embedding_forward_ref(x, raw):
    B = x.shape[0]
    n, S, L, D = NUM_VAR, STEP_SIZE, TIME_STEP, D_MODEL
    dn = ('NCH', 'OIH', 'NCH')
    xr = x.reshape(B, n, S, L).transpose(0, 1, 3, 2)                            # (B,n,L,S)
    y = jnp.einsum('bnls,ds->bnld', xr, raw['w_emb']) + raw['b_emb']            # Linear
    y = y.reshape(B * n * L, 1, D)
    y = lax.conv_general_dilated(y, raw['w_conv0_3d'], (1,), [(1, 1)],
                                 dimension_numbers=dn) + raw['b_conv0'].reshape(1, 1, 1)
    y = y.reshape(B, n * L, D)
    y = lax.conv_general_dilated(y, raw['W1'], (1,), [(1, 1)], dimension_numbers=dn,
                                 feature_group_count=n) + raw['b1'].reshape(1, -1, 1)
    y = y.reshape(B, n, L, D).transpose(0, 2, 1, 3).reshape(B, L * n, D)
    y = lax.conv_general_dilated(y, raw['W2'], (1,), [(1, 1)], dimension_numbers=dn,
                                 feature_group_count=L) + raw['b2'].reshape(1, -1, 1)
    y = y.reshape(B * L, n, D)
    y = lax.conv_general_dilated(y, raw['W3'], (1,), [(0, 0)],
                                 dimension_numbers=dn) + raw['b3'].reshape(1, 1, 1)
    return y.reshape(B, L, D)


if __name__ == "__main__":
    n, S, L, D = NUM_VAR, STEP_SIZE, TIME_STEP, D_MODEL
    key = jax.random.PRNGKey(0)
    ks = jax.random.split(key, 11)

    # deterministic synthetic parameters (shapes match the PyTorch module)
    raw = {
        'w_emb': 0.1 * jax.random.normal(ks[0], (D, S), jnp.float32),           # Linear (d_model, step_size)
        'b_emb': 0.1 * jax.random.normal(ks[1], (D,), jnp.float32),
        'w_conv0_3d': 0.1 * jax.random.normal(ks[2], (1, 1, KERNEL_SIZE), jnp.float32),
        'b_conv0': 0.1 * jax.random.normal(ks[3], (1,), jnp.float32),
        'W1': 0.1 * jax.random.normal(ks[4], (n * L, L, 3), jnp.float32),       # conv1: groups=num_var
        'b1': 0.1 * jax.random.normal(ks[5], (n * L,), jnp.float32),
        'W2': 0.1 * jax.random.normal(ks[6], (n * L, n, 3), jnp.float32),       # conv2: groups=time_step
        'b2': 0.1 * jax.random.normal(ks[7], (n * L,), jnp.float32),
        'W3': 0.1 * jax.random.normal(ks[8], (1, n, 1), jnp.float32),           # conv3: 1x1
        'b3': 0.1 * jax.random.normal(ks[9], (1,), jnp.float32),
    }

    # input: (B, num_var, length_point)
    x = jax.random.normal(ks[10], (BATCH, NUM_VAR, LENGTH_POINT), jnp.float32)

    folded = fold_params(raw)
    out = jax.block_until_ready(embedding_forward_pallas(x, folded))
    ref = jax.block_until_ready(embedding_forward_ref(x, raw))

    assert out.shape == (BATCH, TIME_STEP, D_MODEL), out.shape
    max_err = float(jnp.max(jnp.abs(out - ref)))
    assert jnp.allclose(out, ref, atol=1e-3, rtol=2e-3), max_err
    # TODO(synk): the module's `dropout` arg is never applied in forward (no nn.Dropout), nothing to implement.
    print("KERNEL_OK")
</pallas_src>

<mosaic_0001>
module attributes {stable_mosaic.version = 11 : i64} {
  func.func @fused_embedding_kernel(%arg0: memref<2x128xf32, #tpu.memory_space<vmem>>, %arg1: memref<128x512xbf16, #tpu.memory_space<vmem>>, %arg2: memref<1x512xf32, #tpu.memory_space<vmem>>, %arg3: memref<2x512xf32, #tpu.memory_space<vmem>>) attributes {dimension_semantics = [], scalar_prefetch = 0 : i64, scratch_operands = 0 : i64, tpu.core_type = #tpu.core_type<tc>} {
    %c0 = arith.constant 0 : index
    %c0_0 = arith.constant 0 : index
    %0 = vector.load %arg0[%c0, %c0_0] : memref<2x128xf32, #tpu.memory_space<vmem>>, vector<2x128xf32>
    %1 = arith.truncf %0 : vector<2x128xf32> to vector<2x128xbf16>
    %c0_1 = arith.constant 0 : index
    %c0_2 = arith.constant 0 : index
    %2 = vector.load %arg1[%c0_1, %c0_2] : memref<128x512xbf16, #tpu.memory_space<vmem>>, vector<128x512xbf16>
    %cst = arith.constant dense<0.000000e+00> : vector<2x512xf32>
    %3 = tpu.matmul %1, %2, %cst {dimension_numbers = #tpu.dot_dimension_numbers<[1], [0], [0], [1], [0, 0, 1, 1], [], []>} : vector<2x128xbf16>, vector<128x512xbf16>, vector<2x512xf32> -> vector<2x512xf32>
    %c0_3 = arith.constant 0 : index
    %c0_4 = arith.constant 0 : index
    %4 = vector.load %arg2[%c0_3, %c0_4] : memref<1x512xf32, #tpu.memory_space<vmem>>, vector<1x512xf32>
    %5 = vector.broadcast %4 : vector<1x512xf32> to vector<2x512xf32>
    %6 = arith.addf %3, %5 : vector<2x512xf32>
    %c0_5 = arith.constant 0 : index
    %c0_6 = arith.constant 0 : index
    %7 = vector.load %arg3[%c0_5, %c0_6] : memref<2x512xf32, #tpu.memory_space<vmem>>, vector<2x512xf32>
    tpu.vector_store %arg3[%c0_5, %c0_6], %6 {strides = array<i32>} : memref<2x512xf32, #tpu.memory_space<vmem>>, vector<2x512xf32>,
    return
  }
}

</mosaic_0001>

<llo_original>
// kernel: embedding_forward_pallas.1
$region0: #{embedding_forward_pallas.1}
  #allocation0 [shape = 'u32[]', space=smem, size = 0x4, offset = 0x4, fixed_abs, tag = 'smem constant byte address 0x4 - core index']
  #allocation1 [shape = 'u32[72,128]{1,0:T(1,128)}', space=vmem, size = 0x9000, scoped, tag = 'internal scratch']
  %s0 = inlined_call_operand.vmem [shape: f32[2,128], index: 0, kind: input, shape index: {}]
  %s1 = inlined_call_operand.hbm [shape: bf16[128,512], index: 1, kind: input, shape index: {}]
  %s2 = inlined_call_operand.vmem [shape: f32[1,512], index: 2, kind: input, shape index: {}]
  %s3 = inlined_call_operand.vmem [shape: f32[2,512], index: 3, kind: output, shape index: {}]
  %s4 = sld [smem:[#allocation0]]
  $region26: #{embedding_forward_pallas.1} parent=0
    _
  %s6 = ssub.s32 1, %s4
  %s7 = scalar_select 0, %s6, %s4
  $region1: #{embedding_forward_pallas.1} parent=0
    #allocation2 [shape = 'u8[131072]{0}', space=vmem, size = 0x20000, scoped, tag = 'input window, operand 1, single buffered']
    #allocation3 [shape = 's32[1]{0}', space=sflag, size = 0x4, scoped, tag = 'scoped memory for embedding_forward_pallas.1']
    %8 = vsyncpa [#allocation3], 0
    // Predicated region
    $region2: #{embedding_forward_pallas.1} parent=1 // pred_check
      _
    $region3: #{embedding_forward_pallas.1} parent=1 // pred_check_branch
      %10 = sbr.rel (0) target = $region5
    $region4: #{embedding_forward_pallas.1} parent=1 // pred_region
      _
    $region5: #{embedding_forward_pallas.1} parent=1 // pred_fallthru
      _
    // Predicated region
    $region6: #{embedding_forward_pallas.1} parent=1 // pred_check
      _
    $region7: #{embedding_forward_pallas.1} parent=1 // pred_check_branch
      %12 = sbr.rel (0) target = $region9
    $region8: #{embedding_forward_pallas.1} parent=1 // pred_region
      %14 = vsyncadd [#allocation3], 0
      %s15 = sshll.u32 %s1, 4
      %s16 = int_to_ptr.hbm [resolvable:$true] %s15
      %s17 = sshll.u32 [#allocation2], 4
      %s18 = int_to_ptr.vmem [resolvable:$true] %s17
      %23 = dma.hbm_to_vmem [thread:$0]  %s16, 4096, %s18, [#allocation3], 256, 256, 16
    $region9: #{embedding_forward_pallas.1} parent=1 // pred_fallthru
      _
    // Predicated region
    $region10: #{embedding_forward_pallas.1} parent=1 // pred_check
      _
    $region11: #{embedding_forward_pallas.1} parent=1 // pred_check_branch
      %25 = sbr.rel (0) target = $region13
    $region12: #{embedding_forward_pallas.1} parent=1 // pred_region
      _
    $region13: #{embedding_forward_pallas.1} parent=1 // pred_fallthru
      _
    // Predicated region
    $region14: #{embedding_forward_pallas.1} parent=1 // pred_check
      _
    $region15: #{embedding_forward_pallas.1} parent=1 // pred_check_branch
      %27 = sbr.rel (0) target = $region17
    $region16: #{embedding_forward_pallas.1} parent=1 // pred_region
      %29 = dma.done [#allocation3], 4096
    $region17: #{embedding_forward_pallas.1} parent=1 // pred_fallthru
      _
    %v30 = vld [vmem:[%s0] sm:$0x3]
    %v31 = vpack.c.bf16 %v30, %v30
    %v32 = vld [vmem:[#allocation2] sm:$0xff]
    %v33 = vld [vmem:[#allocation2 + $0x8] sm:$0xff]
    %v34 = vld [vmem:[#allocation2 + $0x10] sm:$0xff]
    %v35 = vld [vmem:[#allocation2 + $0x18] sm:$0xff]
    %v36 = vld [vmem:[#allocation2 + $0x20] sm:$0xff]
    %v37 = vld [vmem:[#allocation2 + $0x28] sm:$0xff]
    %v38 = vld [vmem:[#allocation2 + $0x30] sm:$0xff]
    %v39 = vld [vmem:[#allocation2 + $0x38] sm:$0xff]
    %v40 = vld [vmem:[#allocation2 + $0x40] sm:$0xff]
    %v41 = vld [vmem:[#allocation2 + $0x48] sm:$0xff]
    %v42 = vld [vmem:[#allocation2 + $0x50] sm:$0xff]
    %v43 = vld [vmem:[#allocation2 + $0x58] sm:$0xff]
    %v44 = vld [vmem:[#allocation2 + $0x60] sm:$0xff]
    %v45 = vld [vmem:[#allocation2 + $0x68] sm:$0xff]
    %v46 = vld [vmem:[#allocation2 + $0x70] sm:$0xff]
    %v47 = vld [vmem:[#allocation2 + $0x78] sm:$0xff]
    %v48 = vld [vmem:[#allocation2 + $0x80] sm:$0xff]
    %v49 = vld [vmem:[#allocation2 + $0x88] sm:$0xff]
    %v50 = vld [vmem:[#allocation2 + $0x90] sm:$0xff]
    %v51 = vld [vmem:[#allocation2 + $0x98] sm:$0xff]
    %v52 = vld [vmem:[#allocation2 + $0xa0] sm:$0xff]
    %v53 = vld [vmem:[#allocation2 + $0xa8] sm:$0xff]
    %v54 = vld [vmem:[#allocation2 + $0xb0] sm:$0xff]
    %v55 = vld [vmem:[#allocation2 + $0xb8] sm:$0xff]
    %v56 = vld [vmem:[#allocation2 + $0xc0] sm:$0xff]
    %v57 = vld [vmem:[#allocation2 + $0xc8] sm:$0xff]
    %v58 = vld [vmem:[#allocation2 + $0xd0] sm:$0xff]
    %v59 = vld [vmem:[#allocation2 + $0xd8] sm:$0xff]
    %v60 = vld [vmem:[#allocation2 + $0xe0] sm:$0xff]
    %v61 = vld [vmem:[#allocation2 + $0xe8] sm:$0xff]
    %v62 = vld [vmem:[#allocation2 + $0xf0] sm:$0xff]
    %v63 = vld [vmem:[#allocation2 + $0xf8] sm:$0xff]
    %v64 = vld [vmem:[%s2] sm:$0xf]
    %v66 = vperm.slane %v64, 0
    %v67 = vperm.slane %v64, 1
    %v68 = vperm.slane %v64, 2
    %v69 = vperm.slane %v64, 3
    %v106 = vunpack.c.l.b16 %v32
    %v107 = vunpack.c.h.b16 %v32
    %v108 = vunpack.c.l.b16 %v33
    %v109 = vunpack.c.h.b16 %v33
    %v110 = vunpack.c.l.b16 %v34
    %v111 = vunpack.c.h.b16 %v34
    %v112 = vunpack.c.l.b16 %v35
    %v113 = vunpack.c.h.b16 %v35
    %v114 = vunpack.c.l.b16 %v36
    %v115 = vunpack.c.h.b16 %v36
    %v116 = vunpack.c.l.b16 %v37
    %v117 = vunpack.c.h.b16 %v37
    %v118 = vunpack.c.l.b16 %v38
    %v119 = vunpack.c.h.b16 %v38
    %v120 = vunpack.c.l.b16 %v39
    %v121 = vunpack.c.h.b16 %v39
    %v122 = vunpack.c.l.b16 %v40
    %v123 = vunpack.c.h.b16 %v40
    %v124 = vunpack.c.l.b16 %v41
    %v125 = vunpack.c.h.b16 %v41
    %v126 = vunpack.c.l.b16 %v42
    %v127 = vunpack.c.h.b16 %v42
    %v128 = vunpack.c.l.b16 %v43
    %v129 = vunpack.c.h.b16 %v43
    %v130 = vunpack.c.l.b16 %v44
    %v131 = vunpack.c.h.b16 %v44
    %v132 = vunpack.c.l.b16 %v45
    %v133 = vunpack.c.h.b16 %v45
    %v134 = vunpack.c.l.b16 %v46
    %v135 = vunpack.c.h.b16 %v46
    %v136 = vunpack.c.l.b16 %v47
    %v137 = vunpack.c.h.b16 %v47
    %v138 = vunpack.c.l.b16 %v48
    %v139 = vunpack.c.h.b16 %v48
    %v140 = vunpack.c.l.b16 %v49
    %v141 = vunpack.c.h.b16 %v49
    %v142 = vunpack.c.l.b16 %v50
    %v143 = vunpack.c.h.b16 %v50
    %v144 = vunpack.c.l.b16 %v51
    %v145 = vunpack.c.h.b16 %v51
    %v146 = vunpack.c.l.b16 %v52
    %v147 = vunpack.c.h.b16 %v52
    %v148 = vunpack.c.l.b16 %v53
    %v149 = vunpack.c.h.b16 %v53
    %v150 = vunpack.c.l.b16 %v54
    %v151 = vunpack.c.h.b16 %v54
    %v152 = vunpack.c.l.b16 %v55
    %v153 = vunpack.c.h.b16 %v55
    %v154 = vunpack.c.l.b16 %v56
    %v155 = vunpack.c.h.b16 %v56
    %v156 = vunpack.c.l.b16 %v57
    %v157 = vunpack.c.h.b16 %v57
    %v158 = vunpack.c.l.b16 %v58
    %v159 = vunpack.c.h.b16 %v58
    %v160 = vunpack.c.l.b16 %v59
    %v161 = vunpack.c.h.b16 %v59
    %v162 = vunpack.c.l.b16 %v60
    %v163 = vunpack.c.h.b16 %v60
    %v164 = vunpack.c.l.b16 %v61
    %v165 = vunpack.c.h.b16 %v61
    %v166 = vunpack.c.l.b16 %v62
    %v167 = vunpack.c.h.b16 %v62
    %v168 = vunpack.c.l.b16 %v63
    %v169 = vunpack.c.h.b16 %v63
    %v170 = vpack.c.b16 %v110, %v106
    %v171 = vpack.c.b16 %v111, %v107
    %v172 = vpack.c.b16 %v112, %v108
    %v173 = vpack.c.b16 %v113, %v109
    %v174 = vpack.c.b16 %v118, %v114
    %v175 = vpack.c.b16 %v119, %v115
    %v176 = vpack.c.b16 %v120, %v116
    %v177 = vpack.c.b16 %v121, %v117
    %v178 = vpack.c.b16 %v126, %v122
    %v179 = vpack.c.b16 %v127, %v123
    %v180 = vpack.c.b16 %v128, %v124
    %v181 = vpack.c.b16 %v129, %v125
    %v182 = vpack.c.b16 %v134, %v130
    %v183 = vpack.c.b16 %v135, %v131
    %v184 = vpack.c.b16 %v136, %v132
    %v185 = vpack.c.b16 %v137, %v133
    %v186 = vpack.c.b16 %v142, %v138
    %v187 = vpack.c.b16 %v143, %v139
    %v188 = vpack.c.b16 %v144, %v140
    %v189 = vpack.c.b16 %v145, %v141
    %v190 = vpack.c.b16 %v150, %v146
    %v191 = vpack.c.b16 %v151, %v147
    %v192 = vpack.c.b16 %v152, %v148
    %v193 = vpack.c.b16 %v153, %v149
    %v194 = vpack.c.b16 %v158, %v154
    %v195 = vpack.c.b16 %v159, %v155
    %v196 = vpack.c.b16 %v160, %v156
    %v197 = vpack.c.b16 %v161, %v157
    %v198 = vpack.c.b16 %v166, %v162
    %v199 = vpack.c.b16 %v167, %v163
    %v200 = vpack.c.b16 %v168, %v164
    %v201 = vpack.c.b16 %v169, %v165
    %234 = vmatpush.bf16.msra.mxu0 %v198
    %235 = vmatpush.bf16.msra.mxu0 %v194
    %236 = vmatpush.bf16.msra.mxu0 %v190
    %237 = vmatpush.bf16.msra.mxu0 %v186
    %238 = vmatpush.bf16.msra.mxu0 %v182
    %239 = vmatpush.bf16.msra.mxu0 %v178
    %240 = vmatpush.bf16.msra.mxu0 %v174
    %241 = vmatpush.bf16.msra.mxu0 %v170
    %242 = vmatmul.bf16.gmra.mxu0 %v31
    %v243 = vpop.f32.mrf.mxu0
    %v244 = vadd.f32 %v66, %v243
    %v245 = vpop.f32.mrf.mxu0
    %246 = vdwg.mxu0
    %247 = vmatpush.bf16.msra.mxu0 %v199
    %248 = vmatpush.bf16.msra.mxu0 %v195
    %249 = vmatpush.bf16.msra.mxu0 %v191
    %250 = vmatpush.bf16.msra.mxu0 %v187
    %251 = vmatpush.bf16.msra.mxu0 %v183
    %252 = vmatpush.bf16.msra.mxu0 %v179
    %253 = vmatpush.bf16.msra.mxu0 %v175
    %254 = vmatpush.bf16.msra.mxu0 %v171
    %255 = vmatmul.bf16.gmra.mxu0 %v31
    %v256 = vpop.f32.mrf.mxu0
    %v257 = vadd.f32 %v67, %v256
    %v258 = vpop.f32.mrf.mxu0
    %259 = vdwg.mxu0
    %260 = vmatpush.bf16.msra.mxu0 %v200
    %261 = vmatpush.bf16.msra.mxu0 %v196
    %262 = vmatpush.bf16.msra.mxu0 %v192
    %263 = vmatpush.bf16.msra.mxu0 %v188
    %264 = vmatpush.bf16.msra.mxu0 %v184
    %265 = vmatpush.bf16.msra.mxu0 %v180
    %266 = vmatpush.bf16.msra.mxu0 %v176
    %267 = vmatpush.bf16.msra.mxu0 %v172
    %268 = vmatmul.bf16.gmra.mxu0 %v31
    %v269 = vpop.f32.mrf.mxu0
    %v270 = vadd.f32 %v68, %v269
    %v271 = vpop.f32.mrf.mxu0
    %272 = vdwg.mxu0
    %273 = vmatpush.bf16.msra.mxu0 %v201
    %274 = vmatpush.bf16.msra.mxu0 %v197
    %275 = vmatpush.bf16.msra.mxu0 %v193
    %276 = vmatpush.bf16.msra.mxu0 %v189
    %277 = vmatpush.bf16.msra.mxu0 %v185
    %278 = vmatpush.bf16.msra.mxu0 %v181
    %279 = vmatpush.bf16.msra.mxu0 %v177
    %280 = vmatpush.bf16.msra.mxu0 %v173
    %281 = vmatmul.bf16.gmra.mxu0 %v31
    %v282 = vpop.f32.mrf.mxu0
    %v283 = vadd.f32 %v69, %v282
    %v284 = vpop.f32.mrf.mxu0
    %285 = vdwg.mxu0
    %v290 = vrot.slane %v257, 6
    %v291 = vrot.slane %v270, 4
    %v292 = vrot.slane %v283, 2
    %vm293 = vcmask 1041408
    %v294 = vsel %vm293, %v244, %v290
    %vm295 = vcmask 1045508
    %v296 = vsel %vm295, %v291, %v292
    %vm297 = vcmask 1043456
    %v298 = vsel %vm297, %v294, %v296
    %300 = vst [vmem:[%s3] sm:$0xff] %v298
    // Predicated region
    $region18: #{embedding_forward_pallas.1} parent=1 // pred_check
      _
    $region19: #{embedding_forward_pallas.1} parent=1 // pred_check_branch
      %302 = sbr.rel (0) target = $region21
    $region20: #{embedding_forward_pallas.1} parent=1 // pred_region
      _
    $region21: #{embedding_forward_pallas.1} parent=1 // pred_fallthru
      _
    // Predicated region
    $region22: #{embedding_forward_pallas.1} parent=1 // pred_check
      _
    $region23: #{embedding_forward_pallas.1} parent=1 // pred_check_branch
      %304 = sbr.rel (0) target = $region25
    $region24: #{embedding_forward_pallas.1} parent=1 // pred_region
      _
    $region25: #{embedding_forward_pallas.1} parent=1 // pred_fallthru
      _
    %305 = vsyncpa [#allocation3], 1

</llo_original>
